<compile_context>
chip_gen: v6e
topology: v6e:2x2x1
jax: 0.10.0
libtpu: 0.0.40
codegen_flags: <defaults>
</compile_context>

<pallas_src>
import functools

import jax
import jax.numpy as jnp
from jax.experimental import pallas as pl
from jax.experimental.pallas import tpu as pltpu


def _round_up(x: int, m: int) -> int:
    return ((x + m - 1) // m) * m


# --------------------------------------------------------------------------- #
# Kernel
# --------------------------------------------------------------------------- #
def _mlp_kernel(x_ref, w1_ref, b1_ref, w2_ref, b2_ref, o_ref, acc_ref, *,
                compute_dtype):
    """One (row-tile, hidden-tile) step of  y = relu(x @ W1 + b1) @ W2 + b2.

    Grid = (num_row_blocks, num_hidden_blocks). The hidden axis is the
    reduction (K) axis of the second matmul: partial products accumulate in an
    f32 VMEM scratch; the output tile is written on the last hidden step.

    VMEM tiles:
      x_ref  : (block_m, d_in)      input dtype (cast per-tile if needed)
      w1_ref : (d_in, block_h)      already in compute_dtype (pre-cast outside)
      b1_ref : (1, block_h)         f32
      w2_ref : (block_h, d_out_p)   already in compute_dtype (pre-cast outside)
      b2_ref : (1, d_out_p)         f32
      o_ref  : (block_m, d_out_p)
      acc_ref: (block_m, d_out_p)   f32 accumulator scratch
    """
    j = pl.program_id(1)

    @pl.when(j == 0)
    def _():
        acc_ref[...] = jnp.zeros_like(acc_ref)

    x = x_ref[...]
    if x.dtype != compute_dtype:
        x = x.astype(compute_dtype)   # small per-tile cast; weights are pre-cast

    # Layer 1 (this hidden slice): MXU matmul, f32 accumulation, f32 bias+ReLU.
    h = jnp.dot(x, w1_ref[...], preferred_element_type=jnp.float32)
    h = jnp.maximum(h + b1_ref[...], 0.0)

    # Layer 2 partial product over this hidden slice.
    acc_ref[...] += jnp.dot(h.astype(compute_dtype), w2_ref[...],
                            preferred_element_type=jnp.float32)

    @pl.when(j == pl.num_programs(1) - 1)
    def _():
        o_ref[...] = (acc_ref[...] + b2_ref[...]).astype(o_ref.dtype)


# --------------------------------------------------------------------------- #
# Capability / hardware queries (cached)
# --------------------------------------------------------------------------- #
_BUFFERED1_OK = None


def _buffered_one_supported() -> bool:
    """Probe (once, tiny shapes) whether pipeline_mode=pl.Buffered(1) lowers on
    this jax/Mosaic build, so real calls never have genuine errors swallowed."""
    global _BUFFERED1_OK
    if _BUFFERED1_OK is None:
        def probe_kernel(a_ref, c_ref, o_ref):
            o_ref[...] = a_ref[...] + c_ref[...]

        try:
            a = jnp.zeros((16, 128), jnp.float32)
            c = jnp.ones((8, 128), jnp.float32)
            out = pl.pallas_call(
                probe_kernel,
                out_shape=jax.ShapeDtypeStruct((16, 128), jnp.float32),
                grid=(2,),
                in_specs=[
                    pl.BlockSpec((8, 128), lambda i: (i, 0)),
                    pl.BlockSpec((8, 128), lambda i: (0, 0),
                                 pipeline_mode=pl.Buffered(1)),
                ],
                out_specs=pl.BlockSpec((8, 128), lambda i: (i, 0)),
            )(a, c)
            jax.block_until_ready(out)
            _BUFFERED1_OK = True
        except Exception:
            _BUFFERED1_OK = False
    return _BUFFERED1_OK


@functools.lru_cache(maxsize=1)
def _scoped_vmem_limit() -> int:
    """Generation-aware scoped-VMEM limit: ~70% of physical VMEM
    (~90 MiB on v5e/v6e's 128 MiB, ~45 MiB on v7x's 64 MiB per TensorCore)."""
    try:
        cap = int(pltpu.get_tpu_info().vmem_capacity_bytes)
    except Exception:
        cap = 64 * 1024 * 1024        # conservative (v7x-sized) fallback
    return max(16 * 1024 * 1024, int(cap * 0.7))


# --------------------------------------------------------------------------- #
# Tiling heuristics
# --------------------------------------------------------------------------- #
def _choose_block_m(B: int, row_align: int, max_block_m: int = 256) -> int:
    # MXU-aligned row tile, clamped for small batches (don't pad B=8 to 256),
    # capped at 256 to match v6e/v7x's 256x256 MXU (128 already saturates v5e).
    bm = min(max_block_m, _round_up(B, row_align))
    # Prefer >= 2 row tiles so the 'parallel' batch axis can occupy both of
    # v7x's TensorCores whenever the batch is large enough to split.
    if _round_up(B, bm) == bm and B > row_align:
        bm = min(bm, _round_up((B + 1) // 2, row_align))
    return bm


def _choose_block_h(d_in: int, hidden: int, d_out_p: int, w_itemsize: int,
                    vmem_limit: int) -> int:
    # Fused single-step path whenever both full weight matrices fit comfortably
    # in VMEM even double-buffered; otherwise tile the hidden (reduction) axis.
    full_bytes = (d_in + d_out_p) * hidden * w_itemsize
    if 2 * full_bytes <= vmem_limit // 2:
        return hidden
    per_col = 2 * (d_in + d_out_p) * w_itemsize          # double-buffered blocks
    bh = max(128, ((vmem_limit // 3) // per_col) // 128 * 128)
    return int(min(bh, _round_up(hidden, 128)))


# --------------------------------------------------------------------------- #
# pallas_call builder + jitted wrapper
# --------------------------------------------------------------------------- #
def _build_call(batch_p, d_in, hidden_p, d_out_p, x_dtype, out_dtype, block_m,
                block_h, compute_dtype, vmem_limit, single_buffer_ok):
    num_m = batch_p // block_m
    num_h = hidden_p // block_h
    weights_invariant = single_buffer_ok and num_h == 1

    def spec(shape, index_map, invariant):
        if invariant:
            # Block index never changes across the grid -> one buffer suffices;
            # halves weight VMEM vs. the default double-buffering.
            return pl.BlockSpec(shape, index_map, pipeline_mode=pl.Buffered(1))
        return pl.BlockSpec(shape, index_map)

    in_specs = [
        pl.BlockSpec((block_m, d_in), lambda i, j: (i, 0)),
        spec((d_in, block_h), lambda i, j: (0, j), weights_invariant),
        spec((1, block_h), lambda i, j: (0, j), weights_invariant),
        spec((block_h, d_out_p), lambda i, j: (j, 0), weights_invariant),
        spec((1, d_out_p), lambda i, j: (0, 0), single_buffer_ok),
    ]

    w_item = jnp.dtype(compute_dtype).itemsize
    flops = 2 * batch_p * hidden_p * (d_in + d_out_p)
    bytes_accessed = (batch_p * d_in * jnp.dtype(x_dtype).itemsize
                      + (d_in + d_out_p) * hidden_p * w_item
                      + 4 * (hidden_p + d_out_p)
                      + batch_p * d_out_p * jnp.dtype(out_dtype).itemsize)

    kernel = functools.partial(_mlp_kernel, compute_dtype=compute_dtype)
    return pl.pallas_call(
        kernel,
        out_shape=jax.ShapeDtypeStruct((batch_p, d_out_p), out_dtype),
        grid_spec=pltpu.PrefetchScalarGridSpec(
            num_scalar_prefetch=0,
            grid=(num_m, num_h),
            in_specs=in_specs,
            out_specs=pl.BlockSpec((block_m, d_out_p), lambda i, j: (i, 0)),
            scratch_shapes=[pltpu.VMEM((block_m, d_out_p), jnp.float32)],
        ),
        compiler_params=pltpu.CompilerParams(
            # Row axis is independent (sharded across v7x's 2 TensorCores);
            # hidden axis is the layer-2 reduction -> 'arbitrary', last.
            dimension_semantics=("parallel", "arbitrary"),
            vmem_limit_bytes=vmem_limit,
        ),
        cost_estimate=pl.CostEstimate(flops=flops, transcendentals=0,
                                      bytes_accessed=bytes_accessed),
    )


@functools.partial(
    jax.jit,
    static_argnames=("block_m", "block_h", "compute_dtype", "vmem_limit",
                     "single_buffer_ok"))
def _mlp_forward_impl(x, w1, b1, w2, b2, *, block_m, block_h, compute_dtype,
                      vmem_limit, single_buffer_ok):
    B, d_in = x.shape
    hidden = w1.shape[1]
    d_out = w2.shape[1]

    batch_p = _round_up(B, block_m)
    hidden_p = _round_up(hidden, block_h)
    d_out_p = _round_up(d_out, 128)   # lane-dense output -> unmasked HBM stores

    # Pre-cast weights ONCE here (not inside the kernel): with bf16 compute this
    # halves weight HBM traffic / VMEM residency and removes the per-grid-step
    # VPU re-cast of d_in*hidden + hidden*d_out elements. Biases stay f32.
    w1c = w1.astype(compute_dtype)
    w2c = w2.astype(compute_dtype)
    b1f = b1.astype(jnp.float32)
    b2f = b2.astype(jnp.float32)

    if batch_p != B:
        # NOTE: padded rows compute relu(b1) @ W2 + b2 (garbage) and are sliced
        # off below; never reduce over the padded output before slicing.
        x = jnp.pad(x, ((0, batch_p - B), (0, 0)))
    if hidden_p != hidden:
        w1c = jnp.pad(w1c, ((0, 0), (0, hidden_p - hidden)))
        b1f = jnp.pad(b1f, ((0, 0), (0, hidden_p - hidden)))
        w2c = jnp.pad(w2c, ((0, hidden_p - hidden), (0, 0)))
    if d_out_p != d_out:
        w2c = jnp.pad(w2c, ((0, 0), (0, d_out_p - d_out)))
        b2f = jnp.pad(b2f, ((0, 0), (0, d_out_p - d_out)))

    call = _build_call(batch_p, d_in, hidden_p, d_out_p, x.dtype, x.dtype,
                       block_m, block_h, compute_dtype, vmem_limit,
                       single_buffer_ok)
    out = call(x, w1c, b1f, w2c, b2f)
    if batch_p != B or d_out_p != d_out:
        out = out[:B, :d_out]
    return out


def mlp_forward(x, w1, b1, w2, b2, *, compute_dtype=jnp.bfloat16,
                block_m=None, block_h=None):
    """Fused SimCLR-MLP forward: relu(x @ W1 + b1) @ W2 + b2.

    compute_dtype: MXU input dtype. bf16 (default) runs the MXU at its native
      rate on v5e/v6e/v7x and halves weight DMA; accumulation, bias and ReLU
      stay f32. Pass jnp.float32 for bit-exact parity with the f32 reference.
    block_m / block_h: optional row-tile / hidden-tile overrides.
    """
    if compute_dtype is None:
        compute_dtype = jnp.float32
    compute_dtype = jnp.dtype(compute_dtype).type   # canonical, hashable

    B, d_in = x.shape
    hidden = w1.shape[1]
    d_out_p = _round_up(w2.shape[1], 128)
    vmem_limit = _scoped_vmem_limit()

    row_align = 16 if jnp.dtype(x.dtype).itemsize < 4 else 8
    if block_m is None:
        block_m = _choose_block_m(B, row_align)
    else:
        block_m = max(row_align, _round_up(block_m, row_align))

    if block_h is None:
        block_h = _choose_block_h(d_in, hidden, d_out_p,
                                  jnp.dtype(compute_dtype).itemsize, vmem_limit)
    else:
        block_h = min(block_h, hidden)
        if block_h < hidden:
            block_h = min(_round_up(block_h, 128), _round_up(hidden, 128))

    return _mlp_forward_impl(
        x, w1, b1, w2, b2,
        block_m=int(block_m), block_h=int(block_h),
        compute_dtype=compute_dtype, vmem_limit=int(vmem_limit),
        single_buffer_ok=bool(_buffered_one_supported()))


def init_mlp_params(key, input_dim, hidden_dim, output_dim, dtype=jnp.float32):
    """Deterministic init mimicking PyTorch nn.Linear default:
    U(-1/sqrt(fan_in), 1/sqrt(fan_in)) for both weight and bias."""
    k1, k2, k3, k4 = jax.random.split(key, 4)
    bound1 = 1.0 / (input_dim ** 0.5)
    bound2 = 1.0 / (hidden_dim ** 0.5)
    # Stored as [in, out] (transpose of PyTorch's [out, in]).
    w1 = jax.random.uniform(k1, (input_dim, hidden_dim), dtype, -bound1, bound1)
    b1 = jax.random.uniform(k2, (1, hidden_dim), dtype, -bound1, bound1)
    w2 = jax.random.uniform(k3, (hidden_dim, output_dim), dtype, -bound2, bound2)
    b2 = jax.random.uniform(k4, (1, output_dim), dtype, -bound2, bound2)
    return w1, b1, w2, b2


if __name__ == "__main__":
    # Small shapes consistent with the module's forward: x is [batch, input_dim].
    batch, input_dim, hidden_dim, output_dim = 8, 32, 64, 16

    key = jax.random.PRNGKey(0)
    kx, kp = jax.random.split(key)
    x = jax.random.normal(kx, (batch, input_dim), dtype=jnp.float32)
    w1, b1, w2, b2 = init_mlp_params(kp, input_dim, hidden_dim, output_dim)

    ref = jnp.maximum(x @ w1 + b1, 0.0) @ w2 + b2

    # 1) Default fast path: bf16 MXU inputs, f32 accumulation/bias/ReLU.
    out_bf16 = jax.block_until_ready(mlp_forward(x, w1, b1, w2, b2))
    assert out_bf16.shape == (batch, output_dim)
    assert jnp.allclose(out_bf16, ref, atol=5e-2, rtol=5e-2), "bf16 path mismatch"

    # 2) Exact f32 path matches the f32 reference tightly.
    out_f32 = jax.block_until_ready(
        mlp_forward(x, w1, b1, w2, b2, compute_dtype=jnp.float32))
    assert jnp.allclose(out_f32, ref, atol=1e-5, rtol=1e-5), "f32 path mismatch"

    # 3) Hidden-axis (K-reduction) tiling path, forced at small shapes.
    hidden2 = 256
    w1b, b1b, w2b, b2b = init_mlp_params(jax.random.PRNGKey(1), input_dim,
                                         hidden2, output_dim)
    ref2 = jnp.maximum(x @ w1b + b1b, 0.0) @ w2b + b2b
    out2 = jax.block_until_ready(
        mlp_forward(x, w1b, b1b, w2b, b2b, compute_dtype=jnp.float32,
                    block_h=128))
    assert jnp.allclose(out2, ref2, atol=1e-4, rtol=1e-4), "tiled path mismatch"

    print("KERNEL_OK")
</pallas_src>

<mosaic_0001>
module attributes {stable_mosaic.version = 11 : i64} {
  func.func @probe_kernel(%arg0: i32, %arg1: memref<8x128xf32, #tpu.memory_space<vmem>>, %arg2: memref<8x128xf32, #tpu.memory_space<vmem>>, %arg3: memref<8x128xf32, #tpu.memory_space<vmem>>) attributes {dimension_semantics = [#tpu.dimension_semantics<arbitrary>], iteration_bounds = array<i64: 2>, scalar_prefetch = 0 : i64, scratch_operands = 0 : i64, tpu.core_type = #tpu.core_type<tc>, window_params = [{transform_indices = @transform_0, window_bounds = array<i64: 8, 128>}, {pipeline_mode = #tpu.pipeline_mode<synchronous>, transform_indices = @transform_1, window_bounds = array<i64: 8, 128>}, {transform_indices = @transform_2, window_bounds = array<i64: 8, 128>}]} {
    %c0 = arith.constant 0 : index
    %c0_0 = arith.constant 0 : index
    %0 = vector.load %arg1[%c0, %c0_0] : memref<8x128xf32, #tpu.memory_space<vmem>>, vector<8x128xf32>
    %c0_1 = arith.constant 0 : index
    %c0_2 = arith.constant 0 : index
    %1 = vector.load %arg2[%c0_1, %c0_2] : memref<8x128xf32, #tpu.memory_space<vmem>>, vector<8x128xf32>
    %2 = arith.addf %0, %1 : vector<8x128xf32>
    %c0_3 = arith.constant 0 : index
    %c0_4 = arith.constant 0 : index
    %3 = vector.load %arg3[%c0_3, %c0_4] : memref<8x128xf32, #tpu.memory_space<vmem>>, vector<8x128xf32>
    tpu.vector_store %arg3[%c0_3, %c0_4], %2 {strides = array<i32>} : memref<8x128xf32, #tpu.memory_space<vmem>>, vector<8x128xf32>,
    return
  }
  func.func @transform_0(%arg0: i32) -> (i32, i32) {
    %c0_i32 = arith.constant 0 : i32
    %c0_i32_0 = arith.constant 0 : i32
    return %arg0, %c0_i32 : i32, i32
  }
  func.func @transform_1(%arg0: i32) -> (i32, i32) {
    %c0_i32 = arith.constant 0 : i32
    %c0_i32_0 = arith.constant 0 : i32
    %c0_i32_1 = arith.constant 0 : i32
    return %c0_i32, %c0_i32_0 : i32, i32
  }
  func.func @transform_2(%arg0: i32) -> (i32, i32) {
    %c0_i32 = arith.constant 0 : i32
    %c0_i32_0 = arith.constant 0 : i32
    return %arg0, %c0_i32 : i32, i32
  }
}

module attributes {stable_mosaic.version = 11 : i64} {
  func.func @_mlp_kernel(%arg0: i32, %arg1: i32, %arg2: memref<8x32xf32, #tpu.memory_space<vmem>>, %arg3: memref<32x64xbf16, #tpu.memory_space<vmem>>, %arg4: memref<1x64xf32, #tpu.memory_space<vmem>>, %arg5: memref<64x128xbf16, #tpu.memory_space<vmem>>, %arg6: memref<1x128xf32, #tpu.memory_space<vmem>>, %arg7: memref<8x128xf32, #tpu.memory_space<vmem>>, %arg8: memref<8x128xf32, #tpu.memory_space<vmem>>) attributes {dimension_semantics = [#tpu.dimension_semantics<parallel>, #tpu.dimension_semantics<arbitrary>], iteration_bounds = array<i64: 1, 1>, scalar_prefetch = 0 : i64, scratch_operands = 1 : i64, tpu.core_type = #tpu.core_type<tc>, window_params = [{transform_indices = @transform_0, window_bounds = array<i64: 8, 32>}, {transform_indices = @transform_1, window_bounds = array<i64: 32, 64>}, {transform_indices = @transform_2, window_bounds = array<i64: 1, 64>}, {transform_indices = @transform_3, window_bounds = array<i64: 64, 128>}, {pipeline_mode = #tpu.pipeline_mode<synchronous>, transform_indices = @transform_4, window_bounds = array<i64: 1, 128>}, {transform_indices = @transform_5, window_bounds = array<i64: 8, 128>}]} {
    %c0_i32 = arith.constant 0 : i32
    %0 = arith.cmpi eq, %arg1, %c0_i32 : i32
    %1 = arith.extui %0 : i1 to i32
    %c0_i32_0 = arith.constant 0 : i32
    %2 = arith.cmpi ne, %1, %c0_i32_0 : i32
    scf.if %2 {
      %cst_16 = arith.constant 0.000000e+00 : f32
      %21 = vector.broadcast %cst_16 : f32 to vector<8x128xf32>
      %c0_17 = arith.constant 0 : index
      %c0_18 = arith.constant 0 : index
      %22 = vector.load %arg8[%c0_17, %c0_18] : memref<8x128xf32, #tpu.memory_space<vmem>>, vector<8x128xf32>
      tpu.vector_store %arg8[%c0_17, %c0_18], %21 {strides = array<i32>} : memref<8x128xf32, #tpu.memory_space<vmem>>, vector<8x128xf32>,
    } else {
    }
    %c0 = arith.constant 0 : index
    %c0_1 = arith.constant 0 : index
    %3 = vector.load %arg2[%c0, %c0_1] : memref<8x32xf32, #tpu.memory_space<vmem>>, vector<8x32xf32>
    %4 = arith.truncf %3 : vector<8x32xf32> to vector<8x32xbf16>
    %c0_2 = arith.constant 0 : index
    %c0_3 = arith.constant 0 : index
    %5 = vector.load %arg3[%c0_2, %c0_3] : memref<32x64xbf16, #tpu.memory_space<vmem>>, vector<32x64xbf16>
    %cst = arith.constant dense<0.000000e+00> : vector<8x64xf32>
    %6 = tpu.matmul %4, %5, %cst {dimension_numbers = #tpu.dot_dimension_numbers<[1], [0], [0], [1], [0, 0, 1, 1], [], []>} : vector<8x32xbf16>, vector<32x64xbf16>, vector<8x64xf32> -> vector<8x64xf32>
    %c0_4 = arith.constant 0 : index
    %c0_5 = arith.constant 0 : index
    %7 = vector.load %arg4[%c0_4, %c0_5] : memref<1x64xf32, #tpu.memory_space<vmem>>, vector<1x64xf32>
    %8 = vector.broadcast %7 : vector<1x64xf32> to vector<8x64xf32>
    %9 = arith.addf %6, %8 : vector<8x64xf32>
    %cst_6 = arith.constant 0.000000e+00 : f32
    %10 = vector.broadcast %cst_6 : f32 to vector<8x64xf32>
    %11 = arith.maximumf %9, %10 : vector<8x64xf32>
    %c0_7 = arith.constant 0 : index
    %c0_8 = arith.constant 0 : index
    %12 = vector.load %arg8[%c0_7, %c0_8] : memref<8x128xf32, #tpu.memory_space<vmem>>, vector<8x128xf32>
    %13 = arith.truncf %11 : vector<8x64xf32> to vector<8x64xbf16>
    %c0_9 = arith.constant 0 : index
    %c0_10 = arith.constant 0 : index
    %14 = vector.load %arg5[%c0_9, %c0_10] : memref<64x128xbf16, #tpu.memory_space<vmem>>, vector<64x128xbf16>
    %cst_11 = arith.constant dense<0.000000e+00> : vector<8x128xf32>
    %15 = tpu.matmul %13, %14, %cst_11 {dimension_numbers = #tpu.dot_dimension_numbers<[1], [0], [0], [1], [0, 0, 1, 1], [], []>} : vector<8x64xbf16>, vector<64x128xbf16>, vector<8x128xf32> -> vector<8x128xf32>
    %16 = arith.addf %12, %15 : vector<8x128xf32>
    %c0_12 = arith.constant 0 : index
    %c0_13 = arith.constant 0 : index
    %17 = vector.load %arg8[%c0_12, %c0_13] : memref<8x128xf32, #tpu.memory_space<vmem>>, vector<8x128xf32>
    tpu.vector_store %arg8[%c0_12, %c0_13], %16 {strides = array<i32>} : memref<8x128xf32, #tpu.memory_space<vmem>>, vector<8x128xf32>,
    %c0_i32_14 = arith.constant 0 : i32
    %18 = arith.cmpi eq, %arg1, %c0_i32_14 : i32
    %19 = arith.extui %18 : i1 to i32
    %c0_i32_15 = arith.constant 0 : i32
    %20 = arith.cmpi ne, %19, %c0_i32_15 : i32
    scf.if %20 {
      %c0_16 = arith.constant 0 : index
      %c0_17 = arith.constant 0 : index
      %21 = vector.load %arg8[%c0_16, %c0_17] : memref<8x128xf32, #tpu.memory_space<vmem>>, vector<8x128xf32>
      %c0_18 = arith.constant 0 : index
      %c0_19 = arith.constant 0 : index
      %22 = vector.load %arg6[%c0_18, %c0_19] : memref<1x128xf32, #tpu.memory_space<vmem>>, vector<1x128xf32>
      %23 = vector.broadcast %22 : vector<1x128xf32> to vector<8x128xf32>
      %24 = arith.addf %21, %23 : vector<8x128xf32>
      %c0_20 = arith.constant 0 : index
      %c0_21 = arith.constant 0 : index
      %25 = vector.load %arg7[%c0_20, %c0_21] : memref<8x128xf32, #tpu.memory_space<vmem>>, vector<8x128xf32>
      tpu.vector_store %arg7[%c0_20, %c0_21], %24 {strides = array<i32>} : memref<8x128xf32, #tpu.memory_space<vmem>>, vector<8x128xf32>,
    } else {
    }
    return
  }
  func.func @transform_0(%arg0: i32, %arg1: i32) -> (i32, i32) {
    %c0_i32 = arith.constant 0 : i32
    %c0_i32_0 = arith.constant 0 : i32
    return %arg0, %c0_i32 : i32, i32
  }
  func.func @transform_1(%arg0: i32, %arg1: i32) -> (i32, i32) {
    %c0_i32 = arith.constant 0 : i32
    %c0_i32_0 = arith.constant 0 : i32
    return %c0_i32, %arg1 : i32, i32
  }
  func.func @transform_2(%arg0: i32, %arg1: i32) -> (i32, i32) {
    %c0_i32 = arith.constant 0 : i32
    %c0_i32_0 = arith.constant 0 : i32
    return %c0_i32, %arg1 : i32, i32
  }
  func.func @transform_3(%arg0: i32, %arg1: i32) -> (i32, i32) {
    %c0_i32 = arith.constant 0 : i32
    %c0_i32_0 = arith.constant 0 : i32
    return %arg1, %c0_i32 : i32, i32
  }
  func.func @transform_4(%arg0: i32, %arg1: i32) -> (i32, i32) {
    %c0_i32 = arith.constant 0 : i32
    %c0_i32_0 = arith.constant 0 : i32
    %c0_i32_1 = arith.constant 0 : i32
    return %c0_i32, %c0_i32_0 : i32, i32
  }
  func.func @transform_5(%arg0: i32, %arg1: i32) -> (i32, i32) {
    %c0_i32 = arith.constant 0 : i32
    %c0_i32_0 = arith.constant 0 : i32
    return %arg0, %c0_i32 : i32, i32
  }
}

</mosaic_0001>

<llo_original>
// kernel: tpu_custom_call.1
$region0: #{tpu_custom_call.1}
  #allocation0 [shape = 'u32[]', space=smem, size = 0x4, offset = 0x4, fixed_abs, tag = 'smem constant byte address 0x4 - core index']
  #allocation1 [shape = 'u32[144,128]{1,0:T(1,128)}', space=vmem, size = 0x12000, scoped, tag = 'internal scratch']
  %s0 = inlined_call_operand.hbm [shape: f32[16,128], index: 0, kind: input, shape index: {}]
  %s1 = inlined_call_operand.hbm [shape: f32[8,128], index: 1, kind: input, shape index: {}]
  %s2 = inlined_call_operand.hbm [shape: f32[16,128], index: 2, kind: output, shape index: {}]
  %s3 = sld [smem:[#allocation0]]
  $region49: #{tpu_custom_call.1} parent=0
    _
  %s5 = ssub.s32 1, %s3
  %s6 = scalar_select 0, %s5, %s3
  $region1: #{tpu_custom_call.1} parent=0
    #allocation2 [shape = 'u8[8192]{0}', space=vmem, size = 0x2000, scoped, tag = 'input window, operand 0']
    #allocation3 [shape = 's32[2]{0}', space=sflag, size = 0x8, scoped, tag = 'scoped memory for tpu_custom_call.1']
    #allocation4 [shape = 's32[2]{0}', space=sflag, size = 0x8, scoped, tag = 'scoped memory for tpu_custom_call.1']
    #allocation5 [shape = 'u8[4096]{0}', space=vmem, size = 0x1000, scoped, tag = 'input window, operand 1, single buffered']
    #allocation6 [shape = 's32[1]{0}', space=sflag, size = 0x4, scoped, tag = 'scoped memory for tpu_custom_call.1']
    #allocation7 [shape = 'u8[8192]{0}', space=vmem, size = 0x2000, scoped, tag = 'output window, operand 0']
    %7 = vsyncpa [#allocation3], 0
    %s8 = scalar_lea.sflag [#allocation3], 1
    %9 = vsyncpa %s8, 0
    %10 = vsyncpa [#allocation6], 0
    %11 = vsyncpa [#allocation4], 0
    %s12 = scalar_lea.sflag [#allocation4], 1
    %13 = vsyncpa %s12, 0
    loop: start=0, step=1, limit=4
    $region2: #{tpu_custom_call.1} parent=1 // loop_pre_header
      _
    $region3: #{tpu_custom_call.1} parent=1 // loop_header
      %s15 = sphi 0, %s19
      %p16 = scmp.ge.s32.totalorder %s15, 4
      %s25 = sphi 0, %s27
      %s28 = sphi 0, %s25
      %s29 = sphi 0, %s28
      %s45 = sphi 0, %s29
      %s49 = sphi 0, %s49
      %s51 = sphi 0, %s49
      %s52 = sphi 0, %s51
      %s66 = sphi 0, %s52
      %s72 = sphi 0, %s74
      %s75 = sphi 0, %s72
      %s76 = sphi 0, %s75
      %s92 = sphi 0, %s76
    $region4: #{tpu_custom_call.1} parent=1 // loop_header_branch
      %18 = sbr.rel (%p16) target = $region8
    $region5: #{tpu_custom_call.1} parent=1 // loop_body
      %s20 = ssub.s32 %s15, 1
      %s21 = ssub.s32 %s15, 2
      %s22 = sadd.s32 %s15, 1
      %s23 = ssub.s32 %s15, %s22
      %p24 = scmp.eq.s32.totalorder %s23, 0
      %s26 = sadd.s32 %s25, 1
      %s27 = scalar_select %p24, %s25, %s26
      %p30 = pneg %p24
      %p31 = scmp.eq.s32.totalorder %s15, 1
      %p32 = por %p30, %p31
      %p33 = scmp.ne.s32.totalorder %s25, %s28
      %p34 = scmp.eq.s32.totalorder %s15, 0
      %p35 = por %p33, %p34
      %p36 = scmp.ne.s32.totalorder %s25, %s28
      %p37 = scmp.eq.s32.totalorder %s20, 1
      %p38 = por %p36, %p37
      %p39 = scmp.ne.s32.totalorder %s28, %s29
      %p40 = scmp.eq.s32.totalorder %s20, 0
      %p41 = por %p39, %p40
      %p42 = scmp.ne.s32.totalorder %s28, %s29
      %p43 = scmp.eq.s32.totalorder %s21, 1
      %p44 = por %p42, %p43
      %p46 = scmp.ne.s32.totalorder %s29, %s45
      %p47 = scmp.eq.s32.totalorder %s21, 0
      %p48 = por %p46, %p47
      %s50 = sadd.s32 %s49, 1
      %p53 = scmp.eq.s32.totalorder %s15, 1
      %p54 = scmp.ne.s32.totalorder %s49, %s51
      %p55 = scmp.eq.s32.totalorder %s15, 0
      %p56 = por %p54, %p55
      %p57 = scmp.ne.s32.totalorder %s49, %s51
      %p58 = scmp.eq.s32.totalorder %s20, 1
      %p59 = por %p57, %p58
      %p60 = scmp.ne.s32.totalorder %s51, %s52
      %p61 = scmp.eq.s32.totalorder %s20, 0
      %p62 = por %p60, %p61
      %p63 = scmp.ne.s32.totalorder %s51, %s52
      %p64 = scmp.eq.s32.totalorder %s21, 1
      %p65 = por %p63, %p64
      %p67 = scmp.ne.s32.totalorder %s52, %s66
      %p68 = scmp.eq.s32.totalorder %s21, 0
      %p69 = por %p67, %p68
      %s70 = ssub.s32 %s15, %s22
      %p71 = scmp.eq.s32.totalorder %s70, 0
      %s73 = sadd.s32 %s72, 1
      %s74 = scalar_select %p71, %s72, %s73
      %p77 = pneg %p71
      %p78 = scmp.eq.s32.totalorder %s15, 1
      %p79 = por %p77, %p78
      %p80 = scmp.ne.s32.totalorder %s72, %s75
      %p81 = scmp.eq.s32.totalorder %s15, 0
      %p82 = por %p80, %p81
      %p83 = scmp.ne.s32.totalorder %s72, %s75
      %p84 = scmp.eq.s32.totalorder %s20, 1
      %p85 = por %p83, %p84
      %p86 = scmp.ne.s32.totalorder %s75, %s76
      %p87 = scmp.eq.s32.totalorder %s20, 0
      %p88 = por %p86, %p87
      %p89 = scmp.ne.s32.totalorder %s75, %s76
      %p90 = scmp.eq.s32.totalorder %s21, 1
      %p91 = por %p89, %p90
      %p93 = scmp.ne.s32.totalorder %s76, %s92
      %p94 = scmp.eq.s32.totalorder %s21, 0
      %p95 = por %p93, %p94
      %p96 = scmp.le.s32.totalorder 1, %s15
      %p97 = scmp.lt.s32.totalorder %s15, 3
      %p98 = pnand %p96, %p97
      %p99 = pneg %p98
      // Predicated region
      $region9: #{tpu_custom_call.1} parent=5 // pred_check
        _
      $region10: #{tpu_custom_call.1} parent=5 // pred_check_branch
        %101 = sbr.rel (%p98) target = $region12
      $region11: #{tpu_custom_call.1} parent=5 // pred_region
        %s102 = ssub.s32 %s15, 1
        // Predicated region
        $region13: #{tpu_custom_call.1} parent=11 // pred_check
          %p103 = pneg %p62
        $region14: #{tpu_custom_call.1} parent=11 // pred_check_branch
          %105 = sbr.rel (%p103) target = $region16
        $region15: #{tpu_custom_call.1} parent=11 // pred_region
          %s107 = ssub.s32 128, 128
          %108 = vsyncadd [#allocation6], %s107
          %s110 = sshll.u32 [#allocation5], 4
          %s111 = int_to_ptr.vmem [resolvable:$true] %s110
          %113 = dma.hbm_to_vmem [thread:$0]  %s1, 128, %s111, [#allocation6]
        $region16: #{tpu_custom_call.1} parent=11 // pred_fallthru
          _
      $region12: #{tpu_custom_call.1} parent=5 // pred_fallthru
        _
      %p114 = scmp.lt.s32.totalorder %s15, 2
      // Predicated region
      $region17: #{tpu_custom_call.1} parent=5 // pred_check
        %p115 = pneg %p114
      $region18: #{tpu_custom_call.1} parent=5 // pred_check_branch
        %117 = sbr.rel (%p115) target = $region20
      $region19: #{tpu_custom_call.1} parent=5 // pred_region
        // Predicated region
        $region21: #{tpu_custom_call.1} parent=19 // pred_check
          %p118 = pneg %p35
        $region22: #{tpu_custom_call.1} parent=19 // pred_check_branch
          %120 = sbr.rel (%p118) target = $region24
        $region23: #{tpu_custom_call.1} parent=19 // pred_region
          %s121 = sand.u32 %s25, 1
          %s122 = scalar_lea.sflag [#allocation3], %s121
          %s123 = sand.u32 %s25, 1
          %s124 = smul.addr %s123, 8
          %s125 = scalar_lea.vmem [#allocation2], %s124
          %s127 = ssub.s32 128, 128
          %128 = vsyncadd %s122, %s127
          %s129 = smul.addr %s15, 128
          %s130 = scalar_lea.hbm %s0, %s129
          %s132 = sshll.u32 %s125, 4
          %s133 = int_to_ptr.vmem [resolvable:$true] %s132
          %135 = dma.hbm_to_vmem [thread:$0]  %s130, 128, %s133, %s122
        $region24: #{tpu_custom_call.1} parent=19 // pred_fallthru
          _
      $region20: #{tpu_custom_call.1} parent=5 // pred_fallthru
        _
      %p136 = scmp.le.s32.totalorder 1, %s15
      %p137 = scmp.lt.s32.totalorder %s15, 3
      %p138 = pnand %p136, %p137
      %p139 = pneg %p138
      // Predicated region
      $region25: #{tpu_custom_call.1} parent=5 // pred_check
        _
      $region26: #{tpu_custom_call.1} parent=5 // pred_check_branch
        %141 = sbr.rel (%p138) target = $region28
      $region27: #{tpu_custom_call.1} parent=5 // pred_region
        %s142 = ssub.s32 %s15, 1
        %s143 = sand.u32 %s28, 1
        %s144 = scalar_lea.sflag [#allocation3], %s143
        %s145 = sand.u32 %s28, 1
        %s146 = smul.addr %s145, 8
        %s147 = scalar_lea.vmem [#allocation2], %s146
        // Predicated region
        $region29: #{tpu_custom_call.1} parent=27 // pred_check
          %p148 = pneg %p41
        $region30: #{tpu_custom_call.1} parent=27 // pred_check_branch
          %150 = sbr.rel (%p148) target = $region32
        $region31: #{tpu_custom_call.1} parent=27 // pred_region
          %151 = dma.done %s144, 128
        $region32: #{tpu_custom_call.1} parent=27 // pred_fallthru
          _
        // Predicated region
        $region33: #{tpu_custom_call.1} parent=27 // pred_check
          %p152 = pneg %p62
        $region34: #{tpu_custom_call.1} parent=27 // pred_check_branch
          %154 = sbr.rel (%p152) target = $region36
        $region35: #{tpu_custom_call.1} parent=27 // pred_region
          %155 = dma.done [#allocation6], 128
        $region36: #{tpu_custom_call.1} parent=27 // pred_fallthru
          _
        %s156 = sand.u32 %s28, 1
        %s157 = scalar_lea.sflag [#allocation3], %s156
        %s158 = sand.u32 %s28, 1
        %s159 = smul.addr %s158, 8
        %s160 = scalar_lea.vmem [#allocation2], %s159
        %p161 = pneg %p41
        %p162 = pneg %p38
        %p163 = pneg %p62
        %p164 = pneg %p59
        %p165 = pneg %p88
        %p166 = pneg %p85
        %s167 = sand.u32 %s75, 1
        %s168 = scalar_lea.sflag [#allocation4], %s167
        %s169 = sand.u32 %s75, 1
        %s170 = smul.addr %s169, 8
        %s171 = scalar_lea.vmem [#allocation7], %s170
        %v172 = vld [vmem:[%s147] sm:$0xff]
        %v173 = vld [vmem:[#allocation5] sm:$0xff]
        %v174 = vadd.f32 %v172, %v173
        %175 = vst [vmem:[%s171] sm:$0xff] %v174
        %s176 = sand.u32 %s75, 1
        %s177 = scalar_lea.sflag [#allocation4], %s176
        %s178 = sand.u32 %s75, 1
        %s179 = smul.addr %s178, 8
        %s180 = scalar_lea.vmem [#allocation7], %s179
        // Predicated region
        $region37: #{tpu_custom_call.1} parent=27 // pred_check
          %p181 = pneg %p85
        $region38: #{tpu_custom_call.1} parent=27 // pred_check_branch
          %183 = sbr.rel (%p181) target = $region40
        $region39: #{tpu_custom_call.1} parent=27 // pred_region
          %s185 = ssub.s32 128, 128
          %186 = vsyncadd %s177, %s185
          %s187 = smul.addr %s20, 128
          %s188 = scalar_lea.hbm %s2, %s187
          %s190 = sshll.u32 %s180, 4
          %s191 = int_to_ptr.vmem [resolvable:$true] %s190
          %193 = dma.vmem_to_hbm [thread:$0]  %s191, 128, %s188, %s177
        $region40: #{tpu_custom_call.1} parent=27 // pred_fallthru
          _
      $region28: #{tpu_custom_call.1} parent=5 // pred_fallthru
        _
      %p194 = scmp.le.s32.totalorder 2, %s15
      // Predicated region
      $region41: #{tpu_custom_call.1} parent=5 // pred_check
        %p195 = pneg %p194
      $region42: #{tpu_custom_call.1} parent=5 // pred_check_branch
        %197 = sbr.rel (%p195) target = $region44
      $region43: #{tpu_custom_call.1} parent=5 // pred_region
        %s198 = ssub.s32 %s15, 2
        // Predicated region
        $region45: #{tpu_custom_call.1} parent=43 // pred_check
          %p199 = pneg %p91
        $region46: #{tpu_custom_call.1} parent=43 // pred_check_branch
          %201 = sbr.rel (%p199) target = $region48
        $region47: #{tpu_custom_call.1} parent=43 // pred_region
          %s202 = sand.u32 %s76, 1
          %s203 = scalar_lea.sflag [#allocation4], %s202
          %s204 = sand.u32 %s76, 1
          %s205 = smul.addr %s204, 8
          %s206 = scalar_lea.vmem [#allocation7], %s205
          %207 = dma.done %s203, 128
        $region48: #{tpu_custom_call.1} parent=43 // pred_fallthru
          _
      $region44: #{tpu_custom_call.1} parent=5 // pred_fallthru
        _
    $region6: #{tpu_custom_call.1} parent=1 // loop_footer
      %s19 = sadd.s32 1, %s15
    $region7: #{tpu_custom_call.1} parent=1 // loop_footer_branch
      %14 = sbr.rel target = $region3
    $region8: #{tpu_custom_call.1} parent=1 // loop_exit
      _
    %208 = vsyncpa [#allocation3], 1
    %s209 = scalar_lea.sflag [#allocation3], 1
    %210 = vsyncpa %s209, 1
    %211 = vsyncpa [#allocation6], 1
    %212 = vsyncpa [#allocation4], 1
    %s213 = scalar_lea.sflag [#allocation4], 1
    %214 = vsyncpa %s213, 1

// kernel: _mlp_forward_impl.1
$region0: #{_mlp_forward_impl.1}
  #allocation0 [shape = 'u32[]', space=smem, size = 0x4, offset = 0x4, fixed_abs, tag = 'smem constant byte address 0x4 - core index']
  #allocation1 [shape = 'u32[144,128]{1,0:T(1,128)}', space=vmem, size = 0x12000, scoped, tag = 'internal scratch']
  #allocation2 [shape = 'f32[8,128]{1,0:T(8,128)}', space=vmem, size = 0x1000, scoped, tag = 'scratch operand']
  %s0 = inlined_call_operand.vmem [shape: f32[8,32], index: 0, kind: input, shape index: {}]
  %s1 = inlined_call_operand.vmem [shape: bf16[32,64], index: 1, kind: input, shape index: {}]
  %s2 = inlined_call_operand.vmem [shape: f32[1,64], index: 2, kind: input, shape index: {}]
  %s3 = inlined_call_operand.vmem [shape: bf16[64,128], index: 3, kind: input, shape index: {}]
  %s4 = inlined_call_operand.vmem [shape: f32[1,128], index: 4, kind: input, shape index: {}]
  %s5 = inlined_call_operand.hbm [shape: f32[8,128], index: 5, kind: output, shape index: {}]
  %s6 = sld [smem:[#allocation0]]
  $region38: #{_mlp_forward_impl.1} parent=0
    _
  %s8 = ssub.s32 1, %s6
  %s9 = scalar_select 0, %s8, %s6
  $region1: #{_mlp_forward_impl.1} parent=0
    #allocation3 [shape = 'u8[4096]{0}', space=vmem, size = 0x1000, scoped, tag = 'output window, operand 0, single buffered']
    #allocation4 [shape = 's32[1]{0}', space=sflag, size = 0x4, scoped, tag = 'scoped memory for _mlp_forward_impl.1']
    %10 = vsyncpa [#allocation4], 0
    // Predicated region
    $region2: #{_mlp_forward_impl.1} parent=1 // pred_check
      _
    $region3: #{_mlp_forward_impl.1} parent=1 // pred_check_branch
      %12 = sbr.rel (0) target = $region5
    $region4: #{_mlp_forward_impl.1} parent=1 // pred_region
      _
    $region5: #{_mlp_forward_impl.1} parent=1 // pred_fallthru
      _
    // Predicated region
    $region6: #{_mlp_forward_impl.1} parent=1 // pred_check
      _
    $region7: #{_mlp_forward_impl.1} parent=1 // pred_check_branch
      %14 = sbr.rel (0) target = $region9
    $region8: #{_mlp_forward_impl.1} parent=1 // pred_region
      _
    $region9: #{_mlp_forward_impl.1} parent=1 // pred_fallthru
      _
    // Predicated region
    $region10: #{_mlp_forward_impl.1} parent=1 // pred_check
      _
    $region11: #{_mlp_forward_impl.1} parent=1 // pred_check_branch
      %16 = sbr.rel (0) target = $region13
    $region12: #{_mlp_forward_impl.1} parent=1 // pred_region
      _
    $region13: #{_mlp_forward_impl.1} parent=1 // pred_fallthru
      _
    // Predicated region
    $region14: #{_mlp_forward_impl.1} parent=1 // pred_check
      _
    $region15: #{_mlp_forward_impl.1} parent=1 // pred_check_branch
      %18 = sbr.rel (0) target = $region17
    $region16: #{_mlp_forward_impl.1} parent=1 // pred_region
      _
    $region17: #{_mlp_forward_impl.1} parent=1 // pred_fallthru
      _
    // Predicated region
    $region18: #{_mlp_forward_impl.1} parent=1 // pred_check
      _
    $region19: #{_mlp_forward_impl.1} parent=1 // pred_check_branch
      %20 = sbr.rel (0) target = $region21
    $region20: #{_mlp_forward_impl.1} parent=1 // pred_region
      _
    $region21: #{_mlp_forward_impl.1} parent=1 // pred_fallthru
      _
    %p22 = scmp.eq.s32.totalorder 0, 0
    // Predicated region
    $region22: #{_mlp_forward_impl.1} parent=1 // pred_check
      %p23 = pneg %p22
    $region23: #{_mlp_forward_impl.1} parent=1 // pred_check_branch
      %25 = sbr.rel (%p23) target = $region25
    $region24: #{_mlp_forward_impl.1} parent=1 // pred_region
      %26 = vst [vmem:[#allocation2] sm:$0xff] 0.0
    $region25: #{_mlp_forward_impl.1} parent=1 // pred_fallthru
      _
    %v27 = vld [vmem:[%s0] sm:$0xff]
    %v28 = vpack.c.bf16 %v27, %v27
    %v29 = vld [vmem:[%s1] sm:$0xf]
    %v30 = vld [vmem:[%s1 + $0x4] sm:$0xf]
    %v31 = vld [vmem:[%s1 + $0x8] sm:$0xf]
    %v32 = vld [vmem:[%s1 + $0xc] sm:$0xf]
    %v33 = vld [vmem:[%s2] sm:$0x1]
    %v35 = vlaneseq
    %v36 = vshrl.u32 %v35, 7
    %v37 = vsub.s32 0, %v36
    %v38 = vrot.slane %v33, %v37
    %v44 = vunpack.c.l.b16 %v29
    %v45 = vunpack.c.l.b16 %v30
    %v46 = vunpack.c.l.b16 %v31
    %v47 = vunpack.c.l.b16 %v32
    %v48 = vpack.c.b16 %v45, %v44
    %v49 = vpack.c.b16 %v47, %v46
    %vm52 = vcmask 261120
    %v54 = vsel %vm52, %v28, 0
    %56 = vmatprep.subr.bf16.mxu0 0
    %57 = vmatpush1.bf16.msra.mxu0 0
    %58 = vmatprep.subr.bf16.mxu0 0
    %59 = vmatpush1.bf16.msra.mxu0 0
    %60 = vmatprep.subr.bf16.mxu0 0
    %61 = vmatpush1.bf16.msra.mxu0 0
    %62 = vmatprep.subr.bf16.mxu0 0
    %63 = vmatpush1.bf16.msra.mxu0 0
    %64 = vmatprep.subr.bf16.mxu0 0
    %65 = vmatpush1.bf16.msra.mxu0 0
    %66 = vmatprep.subr.bf16.mxu0 0
    %67 = vmatpush1.bf16.msra.mxu0 0
    %68 = vmatprep.subr.bf16.mxu0 0
    %69 = vmatpush1.bf16.msra.mxu0 %v49
    %70 = vmatprep.subr.bf16.mxu0 0
    %71 = vmatpush1.bf16.msra.mxu0 %v48
    %72 = vmatprep.subr.bf16.mxu0 0
    %73 = vmatpush2.bf16.msra.mxu0 0
    %74 = vmatprep.subr.bf16.mxu0 0
    %75 = vmatpush2.bf16.msra.mxu0 0
    %76 = vmatprep.subr.bf16.mxu0 0
    %77 = vmatpush2.bf16.msra.mxu0 0
    %78 = vmatprep.subr.bf16.mxu0 0
    %79 = vmatpush2.bf16.msra.mxu0 0
    %80 = vmatprep.subr.bf16.mxu0 0
    %81 = vmatpush2.bf16.msra.mxu0 0
    %82 = vmatprep.subr.bf16.mxu0 0
    %83 = vmatpush2.bf16.msra.mxu0 0
    %84 = vmatprep.subr.bf16.mxu0 0
    %85 = vmatpush2.bf16.msra.mxu0 0
    %86 = vmatprep.subr.bf16.mxu0 0
    %87 = vmatpush2.bf16.msra.mxu0 0
    %88 = vmatprep.mubr.bf16.mxu0 0
    %89 = vmatmul.mubr.bf16.gmra.mxu0 %v54
    %v90 = vpop.f32.mrf.mxu0
    %v91 = vadd.f32 %v38, %v90
    %v92 = vpop.f32.mrf.mxu0
    %v93 = vpop.f32.mrf.mxu0
    %v94 = vpop.f32.mrf.mxu0
    %95 = vdwg.mxu0
    %v96 = vmax.f32 %v91, 0.0
    %v97 = vld [vmem:[#allocation2] sm:$0xff]
    %v98 = vpack.c.bf16 %v96, %v96
    %v99 = vld [vmem:[%s3] sm:$0xf]
    %v100 = vld [vmem:[%s3 + $0x4] sm:$0xf]
    %v101 = vld [vmem:[%s3 + $0x8] sm:$0xf]
    %v102 = vld [vmem:[%s3 + $0xc] sm:$0xf]
    %v103 = vld [vmem:[%s3 + $0x10] sm:$0xf]
    %v104 = vld [vmem:[%s3 + $0x14] sm:$0xf]
    %v105 = vld [vmem:[%s3 + $0x18] sm:$0xf]
    %v106 = vld [vmem:[%s3 + $0x1c] sm:$0xf]
    %v115 = vunpack.c.l.b16 %v99
    %v116 = vunpack.c.l.b16 %v100
    %v117 = vunpack.c.l.b16 %v101
    %v118 = vunpack.c.l.b16 %v102
    %v119 = vunpack.c.l.b16 %v103
    %v120 = vunpack.c.l.b16 %v104
    %v121 = vunpack.c.l.b16 %v105
    %v122 = vunpack.c.l.b16 %v106
    %v123 = vpack.c.b16 %v116, %v115
    %v124 = vpack.c.b16 %v118, %v117
    %v125 = vpack.c.b16 %v120, %v119
    %v126 = vpack.c.b16 %v122, %v121
    %vm131 = vcmask 523264
    %v133 = vsel %vm131, %v98, 0
    %135 = vmatprep.subr.bf16.mxu0 0
    %136 = vmatpush1.bf16.msra.mxu0 0
    %137 = vmatprep.subr.bf16.mxu0 0
    %138 = vmatpush1.bf16.msra.mxu0 0
    %139 = vmatprep.subr.bf16.mxu0 0
    %140 = vmatpush1.bf16.msra.mxu0 0
    %141 = vmatprep.subr.bf16.mxu0 0
    %142 = vmatpush1.bf16.msra.mxu0 0
    %143 = vmatprep.subr.bf16.mxu0 0
    %144 = vmatpush1.bf16.msra.mxu0 %v126
    %145 = vmatprep.subr.bf16.mxu0 0
    %146 = vmatpush1.bf16.msra.mxu0 %v125
    %147 = vmatprep.subr.bf16.mxu0 0
    %148 = vmatpush1.bf16.msra.mxu0 %v124
    %149 = vmatprep.subr.bf16.mxu0 0
    %150 = vmatpush1.bf16.msra.mxu0 %v123
    %151 = vmatprep.subr.bf16.mxu0 0
    %152 = vmatpush2.bf16.msra.mxu0 0
    %153 = vmatprep.subr.bf16.mxu0 0
    %154 = vmatpush2.bf16.msra.mxu0 0
    %155 = vmatprep.subr.bf16.mxu0 0
    %156 = vmatpush2.bf16.msra.mxu0 0
    %157 = vmatprep.subr.bf16.mxu0 0
    %158 = vmatpush2.bf16.msra.mxu0 0
    %159 = vmatprep.subr.bf16.mxu0 0
    %160 = vmatpush2.bf16.msra.mxu0 0
    %161 = vmatprep.subr.bf16.mxu0 0
    %162 = vmatpush2.bf16.msra.mxu0 0
    %163 = vmatprep.subr.bf16.mxu0 0
    %164 = vmatpush2.bf16.msra.mxu0 0
    %165 = vmatprep.subr.bf16.mxu0 0
    %166 = vmatpush2.bf16.msra.mxu0 0
    %167 = vmatprep.mubr.bf16.mxu0 0
    %168 = vmatmul.mubr.bf16.gmra.mxu0 %v133
    %v169 = vpop.f32.mrf.mxu0
    %v170 = vadd.f32 0.0, %v169
    %v171 = vpop.f32.mrf.mxu0
    %v172 = vpop.f32.mrf.mxu0
    %v173 = vpop.f32.mrf.mxu0
    %174 = vdwg.mxu0
    %v175 = vadd.f32 %v97, %v170
    %176 = vst [vmem:[#allocation2] sm:$0xff] %v175
    // Predicated region
    $region26: #{_mlp_forward_impl.1} parent=1 // pred_check
      %p177 = pneg %p22
    $region27: #{_mlp_forward_impl.1} parent=1 // pred_check_branch
      %179 = sbr.rel (%p177) target = $region29
    $region28: #{_mlp_forward_impl.1} parent=1 // pred_region
      %v180 = vld [vmem:[#allocation2] sm:$0xff]
      %v181 = vld [vmem:[%s4] sm:$0x1]
      %v183 = vlaneseq
      %v184 = vshrl.u32 %v183, 7
      %v185 = vsub.s32 0, %v184
      %v186 = vrot.slane %v181, %v185
      %v188 = vadd.f32 %v180, %v186
      %189 = vst [vmem:[#allocation3] sm:$0xff] %v188
    $region29: #{_mlp_forward_impl.1} parent=1 // pred_fallthru
      _
    // Predicated region
    $region30: #{_mlp_forward_impl.1} parent=1 // pred_check
      _
    $region31: #{_mlp_forward_impl.1} parent=1 // pred_check_branch
      %191 = sbr.rel (0) target = $region33
    $region32: #{_mlp_forward_impl.1} parent=1 // pred_region
      %s193 = ssub.s32 128, 128
      %194 = vsyncadd [#allocation4], %s193
      %s196 = sshll.u32 [#allocation3], 4
      %s197 = int_to_ptr.vmem [resolvable:$true] %s196
      %199 = dma.vmem_to_hbm [thread:$0]  %s197, 128, %s5, [#allocation4]
    $region33: #{_mlp_forward_impl.1} parent=1 // pred_fallthru
      _
    // Predicated region
    $region34: #{_mlp_forward_impl.1} parent=1 // pred_check
      _
    $region35: #{_mlp_forward_impl.1} parent=1 // pred_check_branch
      %201 = sbr.rel (0) target = $region37
    $region36: #{_mlp_forward_impl.1} parent=1 // pred_region
      %202 = dma.done [#allocation4], 128
    $region37: #{_mlp_forward_impl.1} parent=1 // pred_fallthru
      _
    %203 = vsyncpa [#allocation4], 1

</llo_original>
